<compile_context>
chip_gen: v7x
topology: tpu7x:2x2x1
jax: 0.10.0
libtpu: 0.0.40
codegen_flags: <defaults>
</compile_context>

<pallas_src>
import functools

import jax
import jax.numpy as jnp
from jax.experimental import pallas as pl
from jax.experimental.pallas import tpu as pltpu


# ---------------------------------------------------------------------------
# Hardware / tiling helpers
# ---------------------------------------------------------------------------
@functools.lru_cache(maxsize=1)
def _vmem_capacity_bytes():
    """Per-core VMEM capacity; conservative fallback if the query fails."""
    try:
        info = pltpu.get_tpu_info()
        cap = getattr(info, "vmem_capacity_bytes", None)
        if cap:
            return int(cap)
    except Exception:
        pass
    return 64 * 1024 * 1024  # v7x per-TensorCore VMEM (smallest of the fleet)


def _sublane_multiple(itemsize):
    # Packed dtypes tile sublanes more coarsely: f32 -> 8, bf16 -> 16, int8 -> 32.
    return max(8, 32 // max(int(itemsize), 1))


def _aligned_divisor(total, cap, mult):
    """Largest divisor of `total` that is <= cap and a multiple of `mult`.
    Falls back to `total` (the full extent is always a legal block dim)."""
    best = None
    r = mult
    stop = min(cap, total)
    while r <= stop:
        if total % r == 0:
            best = r
        r += mult
    return best if best is not None else total


def _lane_tile(hwp, rows, itemsize, budget_bytes, max_tile=None):
    """Largest multiple of 128 dividing hwp with rows*tile*itemsize <= budget."""
    limit = (budget_bytes // max(rows * itemsize, 1)) // 128 * 128
    limit = max(128, limit)
    if max_tile is not None:
        limit = min(limit, max(128, max_tile))
    best = 128
    t = 256
    while t <= hwp:
        if t <= limit and hwp % t == 0:
            best = t
        t += 128
    return best


def _pad_lanes(x2d, hw):
    """Zero-pad the lane (spatial) dim to a multiple of 128. Zeros are harmless
    for sum / sum-of-squares; the divisor stays the true m = n*h*w."""
    hwp = ((hw + 127) // 128) * 128
    if hwp != hw:
        x2d = jnp.pad(x2d, ((0, 0), (0, hwp - hw)))
    return x2d, hwp


# ---------------------------------------------------------------------------
# Kernels
# ---------------------------------------------------------------------------
def _bn_fused_kernel(x_ref, gamma_ref, beta_ref, out_ref, mean_ref, var_ref,
                     *, inv_m, eps):
    """Single-pass BN: stats + normalize from one resident VMEM block."""
    x = x_ref[...].astype(jnp.float32)                        # (N, C, HW)
    s = jnp.sum(x, axis=(0, 2), keepdims=True)                # (1, C, 1)
    q = jnp.sum(x * x, axis=(0, 2), keepdims=True)            # (1, C, 1)
    mean = s * inv_m
    # E[x^2] - E[x]^2 in f32, clamped at 0.
    # TODO(synk): shifted/Welford accumulation if |mean| >> std matters.
    var = jnp.maximum(q * inv_m - mean * mean, 0.0)
    inv_std = jax.lax.rsqrt(var + eps)                         # EUP slot
    scale = gamma_ref[...] * inv_std                           # (1, C, 1)
    shift = beta_ref[...] - mean * scale
    out_ref[...] = (x * scale + shift).astype(out_ref.dtype)
    mean_ref[...] = mean
    var_ref[...] = var


def _bn_stats_kernel(x_ref, sum_ref, sq_ref):
    """Streaming stats: lane-wide (rows, 128) partial sum / sumsq accumulators.

    Hot loop is pure VPU adds over 128-lane chunks (no per-step cross-lane XLU
    reduce, no masked 1-lane stores). Output blocks depend only on grid axis 0,
    so that axis is "parallel" (megacore shardable)."""
    @pl.when(pl.program_id(1) == 0)
    def _init():
        sum_ref[...] = jnp.zeros_like(sum_ref)
        sq_ref[...] = jnp.zeros_like(sq_ref)

    n_chunks = x_ref.shape[1] // 128          # static; bounded by tile choice
    s = sum_ref[...]
    q = sq_ref[...]
    for k in range(n_chunks):                 # fully unrolled, lane-aligned
        xk = x_ref[:, k * 128:(k + 1) * 128].astype(jnp.float32)
        s = s + xk
        q = q + xk * xk
    sum_ref[...] = s
    sq_ref[...] = q


def _bn_norm_kernel(x_ref, scale_ref, shift_ref, out_ref):
    """out = x * scale + shift; scale/shift are per-row (rows, 1) residents."""
    y = x_ref[...].astype(scale_ref.dtype) * scale_ref[...] + shift_ref[...]
    out_ref[...] = y.astype(out_ref.dtype)


# ---------------------------------------------------------------------------
# pallas_call wrappers
# ---------------------------------------------------------------------------
def _bn_fused_call(x3d, gamma_c, beta_c, m, eps, vmem_limit):
    n, c, hw = x3d.shape
    out3, mean3, var3 = pl.pallas_call(
        functools.partial(_bn_fused_kernel, inv_m=1.0 / float(m), eps=float(eps)),
        out_shape=(jax.ShapeDtypeStruct((n, c, hw), x3d.dtype),
                   jax.ShapeDtypeStruct((1, c, 1), jnp.float32),
                   jax.ShapeDtypeStruct((1, c, 1), jnp.float32)),
        compiler_params=pltpu.CompilerParams(vmem_limit_bytes=int(vmem_limit)),
    )(x3d, gamma_c.reshape(1, c, 1), beta_c.reshape(1, c, 1))
    return out3, mean3.reshape(c), var3.reshape(c)


def _stats_streaming(x2p, n, c, block_budget, vmem_limit):
    nc, hwp = x2p.shape
    esz = x2p.dtype.itemsize
    rows = _aligned_divisor(nc, cap=32, mult=_sublane_multiple(esz))
    tile = _lane_tile(hwp, rows, esz, block_budget, max_tile=32 * 128)
    grid = (nc // rows, hwp // tile)
    sum_p, sq_p = pl.pallas_call(
        _bn_stats_kernel,
        out_shape=(jax.ShapeDtypeStruct((nc, 128), jnp.float32),
                   jax.ShapeDtypeStruct((nc, 128), jnp.float32)),
        grid_spec=pltpu.PrefetchScalarGridSpec(
            num_scalar_prefetch=0,
            grid=grid,
            in_specs=[pl.BlockSpec((rows, tile), lambda i, j: (i, j))],
            out_specs=[pl.BlockSpec((rows, 128), lambda i, j: (i, 0)),
                       pl.BlockSpec((rows, 128), lambda i, j: (i, 0))],
        ),
        compiler_params=pltpu.CompilerParams(
            dimension_semantics=("parallel", "arbitrary"),
            vmem_limit_bytes=int(vmem_limit)),
    )(x2p)
    # Tiny cross-lane + cross-N reduction in plain JAX.
    ch_sum = jnp.sum(sum_p.reshape(n, c, 128), axis=(0, 2))   # (C,) f32
    ch_sq = jnp.sum(sq_p.reshape(n, c, 128), axis=(0, 2))     # (C,) f32
    return ch_sum, ch_sq


def _normalize_streaming(x2p, scale_rows, shift_rows, block_budget, vmem_limit):
    nc, hwp = x2p.shape
    esz = x2p.dtype.itemsize
    rows = _aligned_divisor(nc, cap=256, mult=_sublane_multiple(esz))
    tile = _lane_tile(hwp, rows, esz, block_budget)
    grid = (nc // rows, hwp // tile)
    return pl.pallas_call(
        _bn_norm_kernel,
        out_shape=jax.ShapeDtypeStruct((nc, hwp), x2p.dtype),
        grid_spec=pltpu.PrefetchScalarGridSpec(
            num_scalar_prefetch=0,
            grid=grid,
            in_specs=[pl.BlockSpec((rows, tile), lambda i, j: (i, j)),
                      pl.BlockSpec((rows, 1), lambda i, j: (i, 0)),
                      pl.BlockSpec((rows, 1), lambda i, j: (i, 0))],
            out_specs=pl.BlockSpec((rows, tile), lambda i, j: (i, j)),
        ),
        compiler_params=pltpu.CompilerParams(
            dimension_semantics=("parallel", "parallel"),
            vmem_limit_bytes=int(vmem_limit)),
    )(x2p, scale_rows, shift_rows)


# ---------------------------------------------------------------------------
# Forward (BNLayer semantics)
# ---------------------------------------------------------------------------
def bn_layer_forward(x_nchw, gamma, beta, running_mean, running_var,
                     eps=1e-5, momentum=0.1, training=True, force_path=None):
    """BNLayer forward.

    Args:
      x_nchw: (N, C, H, W); gamma/beta/running_mean/running_var: (1, C, 1, 1).
      training: training-mode (batch stats) vs eval-mode (running stats).
      force_path: None (auto) | "fused" | "streaming" (test hook).
    Returns:
      (out_nchw, new_running_mean, new_running_var)
    """
    n, c, h, w = x_nchw.shape
    hw = h * w
    nc = n * c
    m = n * hw
    esz = x_nchw.dtype.itemsize

    # Generation-aware budgets (v7x: 64 MiB VMEM; v5e/v6e: 128 MiB).
    vmem_cap = _vmem_capacity_bytes()
    vmem_limit = min(vmem_cap * 3 // 4, 96 * 1024 * 1024)
    block_budget = max(1 << 20, min(8 << 20, vmem_cap // 16))

    gamma_c = gamma.reshape(c).astype(jnp.float32)
    beta_c = beta.reshape(c).astype(jnp.float32)

    use_fused = False
    if training:
        # in + out + ~3x f32 temporaries of x must fit VMEM with headroom.
        fused_bytes = 2 * nc * hw * esz + 3 * nc * hw * 4
        use_fused = fused_bytes <= min(vmem_cap // 2, 48 * 1024 * 1024)
        if force_path == "fused":
            use_fused = True
        elif force_path == "streaming":
            use_fused = False

    if training and use_fused:
        # -------- fused single-pass path: x touches HBM once each way --------
        x3d = x_nchw.reshape(n, c, hw)
        out3, mean_c, var_c = _bn_fused_call(x3d, gamma_c, beta_c, m, eps,
                                             vmem_limit)
        out_nchw = out3.reshape(n, c, h, w)
    else:
        # -------- streaming two-pass path over the (N*C, HW) view --------
        x2d = x_nchw.reshape(nc, hw)
        x2p, hwp = _pad_lanes(x2d, hw)
        if training:
            ch_sum, ch_sq = _stats_streaming(x2p, n, c, block_budget, vmem_limit)
            mean_c = ch_sum / m
            var_c = jnp.maximum(ch_sq / m - mean_c * mean_c, 0.0)
        else:
            mean_c = running_mean.reshape(c).astype(jnp.float32)
            var_c = running_var.reshape(c).astype(jnp.float32)

        inv_std = jax.lax.rsqrt(var_c + eps)
        scale_c = gamma_c * inv_std                       # (C,)
        shift_c = beta_c - mean_c * scale_c               # (C,)
        compute_dtype = jnp.bfloat16 if x_nchw.dtype == jnp.bfloat16 else jnp.float32
        scale_rows = jnp.broadcast_to(scale_c[None, :], (n, c)).reshape(nc, 1)
        shift_rows = jnp.broadcast_to(shift_c[None, :], (n, c)).reshape(nc, 1)
        out2p = _normalize_streaming(x2p,
                                     scale_rows.astype(compute_dtype),
                                     shift_rows.astype(compute_dtype),
                                     block_budget, vmem_limit)
        out_nchw = out2p[:, :hw].reshape(n, c, h, w)

    # Running-stat update (BNLayer uses the biased variance directly and
    # updates even in eval mode, which is a numeric no-op there).
    mean4 = mean_c.reshape(1, c, 1, 1).astype(running_mean.dtype)
    var4 = var_c.reshape(1, c, 1, 1).astype(running_var.dtype)
    new_running_mean = (1.0 - momentum) * running_mean + momentum * mean4
    new_running_var = (1.0 - momentum) * running_var + momentum * var4
    return out_nchw, new_running_mean, new_running_var


# ---------------------------------------------------------------------------
# Self-test
# ---------------------------------------------------------------------------
if __name__ == "__main__":
    k1, k2 = jax.random.split(jax.random.PRNGKey(0))

    def reference(x, gamma, beta, rm, rv, eps, momentum, training=True):
        if training:
            mean = jnp.mean(x, axis=(0, 2, 3), keepdims=True)
            var = jnp.var(x, axis=(0, 2, 3), keepdims=True)   # biased
        else:
            mean, var = rm, rv
        out = gamma * (x - mean) / jnp.sqrt(var + eps) + beta
        new_rm = (1.0 - momentum) * rm + momentum * mean
        new_rv = (1.0 - momentum) * rv + momentum * var
        return out, new_rm, new_rv

    # ---- Test 1: fused single-pass path (whole x fits in VMEM) ----
    N, C, H, W = 2, 4, 16, 16
    x = jax.random.normal(k1, (N, C, H, W), jnp.float32) * 2.0 + 0.5
    gamma = jnp.ones((1, C, 1, 1), jnp.float32)
    beta = jnp.zeros((1, C, 1, 1), jnp.float32)
    rm = jnp.zeros((1, C, 1, 1), jnp.float32)
    rv = jnp.ones((1, C, 1, 1), jnp.float32)

    fwd = jax.jit(functools.partial(bn_layer_forward, eps=1e-5, momentum=0.1))
    res = fwd(x, gamma, beta, rm, rv)
    jax.block_until_ready(res)
    ref = reference(x, gamma, beta, rm, rv, 1e-5, 0.1)
    for a, b in zip(res, ref):
        assert jnp.allclose(a, b, atol=1e-4, rtol=1e-4)

    # ---- Test 2: streaming two-pass path, HW not a multiple of 128 ----
    N2, C2, H2, W2 = 2, 8, 14, 14
    x2 = jax.random.normal(k2, (N2, C2, H2, W2), jnp.float32) * 1.5 - 0.25
    gamma2 = jnp.full((1, C2, 1, 1), 0.8, jnp.float32)
    beta2 = jnp.full((1, C2, 1, 1), 0.3, jnp.float32)
    rm2 = jnp.zeros((1, C2, 1, 1), jnp.float32)
    rv2 = jnp.ones((1, C2, 1, 1), jnp.float32)

    fwd_stream = jax.jit(functools.partial(bn_layer_forward, eps=1e-5,
                                           momentum=0.1, force_path="streaming"))
    res2 = fwd_stream(x2, gamma2, beta2, rm2, rv2)
    jax.block_until_ready(res2)
    ref2 = reference(x2, gamma2, beta2, rm2, rv2, 1e-5, 0.1)
    for a, b in zip(res2, ref2):
        assert jnp.allclose(a, b, atol=1e-4, rtol=1e-4)

    # ---- Test 3: eval mode (uses running statistics) ----
    fwd_eval = jax.jit(functools.partial(bn_layer_forward, eps=1e-5,
                                         momentum=0.1, training=False))
    res3 = fwd_eval(x, gamma, beta, rm, rv)
    jax.block_until_ready(res3)
    ref3 = reference(x, gamma, beta, rm, rv, 1e-5, 0.1, training=False)
    for a, b in zip(res3, ref3):
        assert jnp.allclose(a, b, atol=1e-4, rtol=1e-4)

    print("KERNEL_OK")
</pallas_src>

<mosaic_0001>
module attributes {stable_mosaic.version = 11 : i64} {
  func.func @_bn_fused_kernel(%arg0: memref<2x4x256xf32, #tpu.memory_space<vmem>>, %arg1: memref<1x4x1xf32, #tpu.memory_space<vmem>>, %arg2: memref<1x4x1xf32, #tpu.memory_space<vmem>>, %arg3: memref<2x4x256xf32, #tpu.memory_space<vmem>>, %arg4: memref<1x4x1xf32, #tpu.memory_space<vmem>>, %arg5: memref<1x4x1xf32, #tpu.memory_space<vmem>>) attributes {dimension_semantics = [], scalar_prefetch = 0 : i64, scratch_operands = 0 : i64, tpu.core_type = #tpu.core_type<tc>} {
    %c0 = arith.constant 0 : index
    %c0_0 = arith.constant 0 : index
    %c0_1 = arith.constant 0 : index
    %0 = vector.load %arg0[%c0, %c0_0, %c0_1] : memref<2x4x256xf32, #tpu.memory_space<vmem>>, vector<2x4x256xf32>
    %cst = arith.constant dense<0.000000e+00> : vector<4xf32>
    %1 = vector.multi_reduction <add>, %0, %cst [0, 2] : vector<2x4x256xf32> to vector<4xf32>
    %2 = vector.shape_cast %1 : vector<4xf32> to vector<1x4x1xf32>
    %3 = arith.mulf %0, %0 : vector<2x4x256xf32>
    %cst_2 = arith.constant dense<0.000000e+00> : vector<4xf32>
    %4 = vector.multi_reduction <add>, %3, %cst_2 [0, 2] : vector<2x4x256xf32> to vector<4xf32>
    %5 = vector.shape_cast %4 : vector<4xf32> to vector<1x4x1xf32>
    %cst_3 = arith.constant 0.001953125 : f32
    %6 = vector.broadcast %cst_3 : f32 to vector<1x4x1xf32>
    %7 = arith.mulf %2, %6 : vector<1x4x1xf32>
    %cst_4 = arith.constant 0.001953125 : f32
    %8 = vector.broadcast %cst_4 : f32 to vector<1x4x1xf32>
    %9 = arith.mulf %5, %8 : vector<1x4x1xf32>
    %10 = arith.mulf %7, %7 : vector<1x4x1xf32>
    %11 = arith.subf %9, %10 : vector<1x4x1xf32>
    %cst_5 = arith.constant 0.000000e+00 : f32
    %12 = vector.broadcast %cst_5 : f32 to vector<1x4x1xf32>
    %13 = arith.maximumf %11, %12 : vector<1x4x1xf32>
    %cst_6 = arith.constant 9.99999974E-6 : f32
    %14 = vector.broadcast %cst_6 : f32 to vector<1x4x1xf32>
    %15 = arith.addf %13, %14 : vector<1x4x1xf32>
    %16 = math.rsqrt %15 : vector<1x4x1xf32>
    %c0_7 = arith.constant 0 : index
    %c0_8 = arith.constant 0 : index
    %c0_9 = arith.constant 0 : index
    %17 = vector.load %arg1[%c0_7, %c0_8, %c0_9] : memref<1x4x1xf32, #tpu.memory_space<vmem>>, vector<1x4x1xf32>
    %18 = arith.mulf %17, %16 : vector<1x4x1xf32>
    %c0_10 = arith.constant 0 : index
    %c0_11 = arith.constant 0 : index
    %c0_12 = arith.constant 0 : index
    %19 = vector.load %arg2[%c0_10, %c0_11, %c0_12] : memref<1x4x1xf32, #tpu.memory_space<vmem>>, vector<1x4x1xf32>
    %20 = arith.mulf %7, %18 : vector<1x4x1xf32>
    %21 = arith.subf %19, %20 : vector<1x4x1xf32>
    %22 = vector.broadcast %18 : vector<1x4x1xf32> to vector<2x4x256xf32>
    %23 = arith.mulf %0, %22 : vector<2x4x256xf32>
    %24 = vector.broadcast %21 : vector<1x4x1xf32> to vector<2x4x256xf32>
    %25 = arith.addf %23, %24 : vector<2x4x256xf32>
    %c0_13 = arith.constant 0 : index
    %c0_14 = arith.constant 0 : index
    %c0_15 = arith.constant 0 : index
    %26 = vector.load %arg3[%c0_13, %c0_14, %c0_15] : memref<2x4x256xf32, #tpu.memory_space<vmem>>, vector<2x4x256xf32>
    tpu.vector_store %arg3[%c0_13, %c0_14, %c0_15], %25 {strides = array<i32>} : memref<2x4x256xf32, #tpu.memory_space<vmem>>, vector<2x4x256xf32>,
    %c0_16 = arith.constant 0 : index
    %c0_17 = arith.constant 0 : index
    %c0_18 = arith.constant 0 : index
    %27 = vector.load %arg4[%c0_16, %c0_17, %c0_18] : memref<1x4x1xf32, #tpu.memory_space<vmem>>, vector<1x4x1xf32>
    tpu.vector_store %arg4[%c0_16, %c0_17, %c0_18], %7 {strides = array<i32>} : memref<1x4x1xf32, #tpu.memory_space<vmem>>, vector<1x4x1xf32>,
    %c0_19 = arith.constant 0 : index
    %c0_20 = arith.constant 0 : index
    %c0_21 = arith.constant 0 : index
    %28 = vector.load %arg5[%c0_19, %c0_20, %c0_21] : memref<1x4x1xf32, #tpu.memory_space<vmem>>, vector<1x4x1xf32>
    tpu.vector_store %arg5[%c0_19, %c0_20, %c0_21], %13 {strides = array<i32>} : memref<1x4x1xf32, #tpu.memory_space<vmem>>, vector<1x4x1xf32>,
    return
  }
}

</mosaic_0001>

<llo_original>
// kernel: bn_layer_forward.1
$region0: #{bn_layer_forward.1}
  #allocation0 [shape = 'u32[]', space=smem, size = 0x4, offset = 0x4, fixed_abs, tag = 'smem constant byte address 0x4 - core index']
  #allocation1 [shape = 'u32[144,128]{1,0:T(1,128)}', space=vmem, size = 0x12000, scoped, tag = 'internal scratch']
  %s0 = inlined_call_operand.vmem [shape: f32[2,4,256], index: 0, kind: input, shape index: {}]
  %s1 = inlined_call_operand.vmem [shape: f32[1,4,1], index: 1, kind: input, shape index: {}]
  %s2 = inlined_call_operand.vmem [shape: f32[1,4,1], index: 2, kind: input, shape index: {}]
  %s3 = inlined_call_operand.vmem [shape: f32[2,4,256], index: 3, kind: output, shape index: {0}]
  %s4 = inlined_call_operand.vmem [shape: f32[1,4,1], index: 4, kind: output, shape index: {1}]
  %s5 = inlined_call_operand.vmem [shape: f32[1,4,1], index: 5, kind: output, shape index: {2}]
  %6 = xla_tuple %s3, %s4, %s5
  %s7 = sld [smem:[#allocation0]]
  $region38: #{bn_layer_forward.1} parent=0
    _
  %s9 = ssub.s32 1, %s7
  %s10 = scalar_select 0, %s9, %s7
  // Predicated region
  $region2: #{bn_layer_forward.1} parent=0 // pred_check
    _
  $region3: #{bn_layer_forward.1} parent=0 // pred_check_branch
    %12 = sbr.rel (0) target = $region5
  $region4: #{bn_layer_forward.1} parent=0 // pred_region
    _
  $region5: #{bn_layer_forward.1} parent=0 // pred_fallthru
    _
  // Predicated region
  $region6: #{bn_layer_forward.1} parent=0 // pred_check
    _
  $region7: #{bn_layer_forward.1} parent=0 // pred_check_branch
    %14 = sbr.rel (0) target = $region9
  $region8: #{bn_layer_forward.1} parent=0 // pred_region
    _
  $region9: #{bn_layer_forward.1} parent=0 // pred_fallthru
    _
  // Predicated region
  $region10: #{bn_layer_forward.1} parent=0 // pred_check
    _
  $region11: #{bn_layer_forward.1} parent=0 // pred_check_branch
    %16 = sbr.rel (0) target = $region13
  $region12: #{bn_layer_forward.1} parent=0 // pred_region
    _
  $region13: #{bn_layer_forward.1} parent=0 // pred_fallthru
    _
  %v17 = vld [vmem:[%s0] sm:$0xff]
  %v18 = vld [vmem:[%s0 + $0x8] sm:$0xff]
  %v21 = vcombine.high %v17, %v17
  %v22 = vcombine.high %v18, %v18
  %vm25 = vcmask 1043456
  %v26 = vsel %vm25, %v17, 0.0
  %v27 = vsel %vm25, %v21, 0.0
  %v28 = vadd.f32 %v26, %v27
  %v29 = vsel %vm25, %v18, 0.0
  %v30 = vadd.f32 %v28, %v29
  %v31 = vsel %vm25, %v22, 0.0
  %v32 = vadd.f32 %v30, %v31
  %33 = vadd.xlane.f32.xlu0 %v32
  %v34 = vpop.xlane.xlu0 %33
  %v35 = vmul.f32 %v17, %v17
  %v36 = vmul.f32 %v18, %v18
  %v39 = vcombine.high %v35, %v35
  %v40 = vcombine.high %v36, %v36
  %v43 = vsel %vm25, %v35, 0.0
  %v44 = vsel %vm25, %v39, 0.0
  %v45 = vadd.f32 %v43, %v44
  %v46 = vsel %vm25, %v36, 0.0
  %v47 = vadd.f32 %v45, %v46
  %v48 = vsel %vm25, %v40, 0.0
  %v49 = vadd.f32 %v47, %v48
  %50 = vadd.xlane.f32.xlu0 %v49
  %v51 = vpop.xlane.xlu0 %50
  %v52 = vmul.f32 %v34, 0.001953125
  %v53 = vmul.f32 %v51, 0.001953125
  %v54 = vmul.f32 %v52, %v52
  %v55 = vsub.f32 %v53, %v54
  %v56 = vmax.f32 %v55, 0.0
  %v57 = vadd.f32 %v56, 1e-05
  %v58 = vrsqrt.pop %v57
  %v59 = vld [vmem:[%s1] sm:$0xf]
  %v60 = vmul.f32 %v59, %v58
  %v61 = vld [vmem:[%s2] sm:$0xf]
  %v62 = vmul.f32 %v52, %v60
  %v63 = vsub.f32 %v61, %v62
  %65 = vset.pattern.permute.xlu0 0
  %66 = vperm.xlu0 %65, %v60
  %v67 = vpop.permute.xlu0 %66
  %v69 = vunpack.c.l.s4 839922192
  %v70 = vunpack.c.0.s8 %v69
  %v71 = vlaneseq
  %v72 = vshrl.u32 %v71, 7
  %v73 = vsub.s32 %v70, %v72
  %v74 = vrot.slane %v67, %v73
  %v76 = vmul.f32 %v17, %v74
  %v77 = vmul.f32 %v18, %v74
  %79 = vset.pattern.permute.xlu0 0
  %80 = vperm.xlu0 %79, %v63
  %v81 = vpop.permute.xlu0 %80
  %v83 = vunpack.c.l.s4 839922192
  %v84 = vunpack.c.0.s8 %v83
  %v85 = vlaneseq
  %v86 = vshrl.u32 %v85, 7
  %v87 = vsub.s32 %v84, %v86
  %v88 = vrot.slane %v81, %v87
  %v90 = vadd.f32 %v76, %v88
  %v91 = vadd.f32 %v77, %v88
  %92 = vst [vmem:[%s3] sm:$0xff] %v90
  %93 = vst [vmem:[%s3 + $0x8] sm:$0xff] %v91
  %vm94 = vcmask 3072
  %95 = vst.msk [vmem:[%s4] sm:$0xf] %vm94, %v52
  %96 = vst.msk [vmem:[%s5] sm:$0xf] %vm94, %v56
  // Predicated region
  $region14: #{bn_layer_forward.1} parent=0 // pred_check
    _
  $region15: #{bn_layer_forward.1} parent=0 // pred_check_branch
    %98 = sbr.rel (0) target = $region17
  $region16: #{bn_layer_forward.1} parent=0 // pred_region
    _
  $region17: #{bn_layer_forward.1} parent=0 // pred_fallthru
    _
  // Predicated region
  $region18: #{bn_layer_forward.1} parent=0 // pred_check
    _
  $region19: #{bn_layer_forward.1} parent=0 // pred_check_branch
    %100 = sbr.rel (0) target = $region21
  $region20: #{bn_layer_forward.1} parent=0 // pred_region
    _
  $region21: #{bn_layer_forward.1} parent=0 // pred_fallthru
    _
  // Predicated region
  $region22: #{bn_layer_forward.1} parent=0 // pred_check
    _
  $region23: #{bn_layer_forward.1} parent=0 // pred_check_branch
    %102 = sbr.rel (0) target = $region25
  $region24: #{bn_layer_forward.1} parent=0 // pred_region
    _
  $region25: #{bn_layer_forward.1} parent=0 // pred_fallthru
    _
  // Predicated region
  $region26: #{bn_layer_forward.1} parent=0 // pred_check
    _
  $region27: #{bn_layer_forward.1} parent=0 // pred_check_branch
    %104 = sbr.rel (0) target = $region29
  $region28: #{bn_layer_forward.1} parent=0 // pred_region
    _
  $region29: #{bn_layer_forward.1} parent=0 // pred_fallthru
    _
  // Predicated region
  $region30: #{bn_layer_forward.1} parent=0 // pred_check
    _
  $region31: #{bn_layer_forward.1} parent=0 // pred_check_branch
    %106 = sbr.rel (0) target = $region33
  $region32: #{bn_layer_forward.1} parent=0 // pred_region
    _
  $region33: #{bn_layer_forward.1} parent=0 // pred_fallthru
    _
  // Predicated region
  $region34: #{bn_layer_forward.1} parent=0 // pred_check
    _
  $region35: #{bn_layer_forward.1} parent=0 // pred_check_branch
    %108 = sbr.rel (0) target = $region37
  $region36: #{bn_layer_forward.1} parent=0 // pred_region
    _
  $region37: #{bn_layer_forward.1} parent=0 // pred_fallthru
    _

</llo_original>
